<compile_context>
chip_gen: v7x
topology: tpu7x:2x2x1
jax: 0.10.0
libtpu: 0.0.40
codegen_flags: <defaults>
</compile_context>

<pallas_src>
import functools
import math

import jax
import jax.numpy as jnp
from jax.experimental import pallas as pl
from jax.experimental.pallas import tpu as pltpu


def _round_up(x, m):
    return ((x + m - 1) // m) * m


def _mix_kernel(x_ref, w_ref, b_ref, o_ref):
    """One M-tile of the per-pixel channel mix: o = x @ w + b.

    x: (TILE_R, KK)  w: (KK, CC)  b: (1, CC)  o: (TILE_R, CC)
    KK and CC are multiples of 128 (lane-dense), so the contraction is one MXU
    matmul and the store is an unmasked vst.  Bias is fused into the store.
    """
    acc = jnp.dot(x_ref[...], w_ref[...], preferred_element_type=jnp.float32)
    o_ref[...] = (acc + b_ref[...]).astype(o_ref.dtype)


@functools.partial(jax.jit, static_argnames=("stride",))
def test_encoder_forward(x_nchw, weight, bias, stride=16):
    """Equivalent of TestEncoder.forward (nn.Conv2d(in_ch, out_ch, 1, stride, 0)).

    x_nchw: (N, in_ch, H, W) float32
    weight: (out_ch, in_ch, 1, 1) float32  (PyTorch Conv2d layout)
    bias:   (out_ch,) float32
    returns (N, out_ch, H_out, W_out) float32
    """
    n, in_ch, h, w = x_nchw.shape
    out_ch = weight.shape[0]
    k, c = in_ch, out_ch

    # --- glue: strided spatial subsample + NCHW -> (M, K) flatten (small array) ---
    # TODO(synk): fuse the slice/transpose into the Pallas input DMA
    # (allow_input_fusion or index_map-driven subsample) to drop the extra HBM
    # round-trip of the subsampled tensor.
    x_sub = x_nchw[:, :, ::stride, ::stride]                  # (N, K, Ho, Wo)
    h_out, w_out = x_sub.shape[2], x_sub.shape[3]
    m = n * h_out * w_out
    x_flat = jnp.transpose(x_sub, (0, 2, 3, 1)).reshape(m, k).astype(jnp.float32)

    w_mat = weight.reshape(c, k).T.astype(jnp.float32)        # (K, C)
    b_vec = bias.astype(jnp.float32)                          # (C,)

    # --- pixel packing: smallest P with P*K and P*C multiples of 128 ---
    p_in = 128 // math.gcd(128, k)
    p_out = 128 // math.gcd(128, c)
    p = (p_in * p_out) // math.gcd(p_in, p_out)               # lcm(p_in, p_out) <= 128

    packed_ok = (p * k) * (p * c) * 4 <= (4 << 20)            # keep W_bd small in VMEM
    if packed_ok:
        kk = p * k                                            # packed input lane width
        cc = p * c                                            # packed output lane width
        # Block-diagonal weight: packed row [pix0(K)..pixP-1(K)] @ W_bd
        #   -> [pix0@W (C) .. pixP-1@W (C)], exactly the packed output layout.
        w_op = jnp.kron(jnp.eye(p, dtype=jnp.float32), w_mat)  # (P*K, P*C)
        b_op = jnp.tile(b_vec, p).reshape(1, cc)
    else:
        # Fallback (huge K and C): no packing, zero-pad out_ch to a lane multiple.
        p = 1
        kk = k
        cc = _round_up(c, 128)
        w_op = jnp.zeros((k, cc), jnp.float32).at[:, :c].set(w_mat)
        b_op = jnp.zeros((1, cc), jnp.float32).at[:, :c].set(b_vec.reshape(1, c))

    # --- pad M to whole packed rows / whole tiles; pick tile so grid >= 2 when able ---
    m_rows = pl.cdiv(m, p)
    if m_rows >= 16:
        # At least 2 grid steps (keeps both v7x TensorCores busy); cap at 1024 rows
        # (~1 MiB output tile -> ~3 MiB double-buffered, far under 32 MiB VMEM).
        tile_r = min(1024, _round_up(pl.cdiv(m_rows, 2), 8))
    else:
        tile_r = _round_up(m_rows, 8)
    m_rows_pad = _round_up(m_rows, tile_r)
    m_pix_pad = m_rows_pad * p
    if m_pix_pad > m:
        x_flat = jnp.pad(x_flat, ((0, m_pix_pad - m), (0, 0)))
    # Row-major (M, K) is byte-identical to (M/P, P*K): packing is a free reshape.
    x_packed = x_flat.reshape(m_rows_pad, kk)
    grid_r = m_rows_pad // tile_r

    out_packed = pl.pallas_call(
        _mix_kernel,
        out_shape=jax.ShapeDtypeStruct((m_rows_pad, cc), jnp.float32),
        grid=(grid_r,),
        in_specs=[
            pl.BlockSpec((tile_r, kk), lambda i: (i, 0)),     # X tile (pipelined)
            pl.BlockSpec((kk, cc), lambda i: (0, 0)),         # W resident
            pl.BlockSpec((1, cc), lambda i: (0, 0)),          # b resident
        ],
        out_specs=pl.BlockSpec((tile_r, cc), lambda i: (i, 0)),
        compiler_params=pltpu.CompilerParams(
            dimension_semantics=("parallel",),                # 2 TCs on v7x
            vmem_limit_bytes=32 * 1024 * 1024,                # safe on v7x 64 MiB VMEM
        ),
    )(x_packed, w_op, b_op)

    # --- unpack: free reshape back to (M, C), drop padded pixels / channels ---
    if packed_ok:
        out_flat = out_packed.reshape(m_pix_pad, c)[:m]
    else:
        out_flat = out_packed[:m, :c]
    out = out_flat.reshape(n, h_out, w_out, c)
    return jnp.transpose(out, (0, 3, 1, 2))


if __name__ == "__main__":
    key = jax.random.PRNGKey(0)
    k_x, k_w, k_b = jax.random.split(key, 3)

    # Small shapes consistent with the module: stride=16 needs H, W >= 16.
    N, IN_CH, OUT_CH, H, W, STRIDE = 2, 4, 8, 32, 32, 16

    x = jax.random.normal(k_x, (N, IN_CH, H, W), dtype=jnp.float32)
    # Deterministic synthetic "Conv2d" parameters (not a checkpoint load).
    weight = jax.random.normal(k_w, (OUT_CH, IN_CH, 1, 1), dtype=jnp.float32) * 0.1
    bias = jax.random.normal(k_b, (OUT_CH,), dtype=jnp.float32) * 0.1

    y = test_encoder_forward(x, weight, bias, stride=STRIDE)
    y = jax.block_until_ready(y)

    # Reference check against the plain-JAX equivalent of the PyTorch conv.
    x_sub = x[:, :, ::STRIDE, ::STRIDE]
    ref = jnp.einsum("nchw,oc->nohw", x_sub, weight.reshape(OUT_CH, IN_CH)) \
        + bias.reshape(1, OUT_CH, 1, 1)
    assert y.shape == (N, OUT_CH, H // STRIDE, W // STRIDE)
    assert jnp.allclose(y, ref, atol=1e-5, rtol=1e-5)

    print("KERNEL_OK")
</pallas_src>

<mosaic_0001>
module attributes {stable_mosaic.version = 11 : i64} {
  func.func @_mix_kernel(%arg0: i32, %arg1: memref<8x128xf32, #tpu.memory_space<vmem>>, %arg2: memref<128x256xf32, #tpu.memory_space<vmem>>, %arg3: memref<1x256xf32, #tpu.memory_space<vmem>>, %arg4: memref<8x256xf32, #tpu.memory_space<vmem>>) attributes {dimension_semantics = [#tpu.dimension_semantics<parallel>], iteration_bounds = array<i64: 1>, scalar_prefetch = 0 : i64, scratch_operands = 0 : i64, tpu.core_type = #tpu.core_type<tc>, window_params = [{transform_indices = @transform_0, window_bounds = array<i64: 8, 128>}, {pipeline_mode = #tpu.pipeline_mode<synchronous>, transform_indices = @transform_1, window_bounds = array<i64: 128, 256>}, {pipeline_mode = #tpu.pipeline_mode<synchronous>, transform_indices = @transform_2, window_bounds = array<i64: 1, 256>}, {transform_indices = @transform_3, window_bounds = array<i64: 8, 256>}]} {
    %c0 = arith.constant 0 : index
    %c0_0 = arith.constant 0 : index
    %0 = vector.load %arg1[%c0, %c0_0] : memref<8x128xf32, #tpu.memory_space<vmem>>, vector<8x128xf32>
    %c0_1 = arith.constant 0 : index
    %c0_2 = arith.constant 0 : index
    %1 = vector.load %arg2[%c0_1, %c0_2] : memref<128x256xf32, #tpu.memory_space<vmem>>, vector<128x256xf32>
    %cst = arith.constant dense<0.000000e+00> : vector<8x256xf32>
    %2 = tpu.matmul %0, %1, %cst {dimension_numbers = #tpu.dot_dimension_numbers<[1], [0], [0], [1], [0, 0, 1, 1], [], []>} : vector<8x128xf32>, vector<128x256xf32>, vector<8x256xf32> -> vector<8x256xf32>
    %c0_3 = arith.constant 0 : index
    %c0_4 = arith.constant 0 : index
    %3 = vector.load %arg3[%c0_3, %c0_4] : memref<1x256xf32, #tpu.memory_space<vmem>>, vector<1x256xf32>
    %4 = vector.broadcast %3 : vector<1x256xf32> to vector<8x256xf32>
    %5 = arith.addf %2, %4 : vector<8x256xf32>
    %c0_5 = arith.constant 0 : index
    %c0_6 = arith.constant 0 : index
    %6 = vector.load %arg4[%c0_5, %c0_6] : memref<8x256xf32, #tpu.memory_space<vmem>>, vector<8x256xf32>
    tpu.vector_store %arg4[%c0_5, %c0_6], %5 {strides = array<i32>} : memref<8x256xf32, #tpu.memory_space<vmem>>, vector<8x256xf32>,
    return
  }
  func.func @transform_0(%arg0: i32) -> (i32, i32) {
    %c0_i32 = arith.constant 0 : i32
    %c0_i32_0 = arith.constant 0 : i32
    return %arg0, %c0_i32 : i32, i32
  }
  func.func @transform_1(%arg0: i32) -> (i32, i32) {
    %c0_i32 = arith.constant 0 : i32
    %c0_i32_0 = arith.constant 0 : i32
    %c0_i32_1 = arith.constant 0 : i32
    return %c0_i32, %c0_i32_0 : i32, i32
  }
  func.func @transform_2(%arg0: i32) -> (i32, i32) {
    %c0_i32 = arith.constant 0 : i32
    %c0_i32_0 = arith.constant 0 : i32
    %c0_i32_1 = arith.constant 0 : i32
    return %c0_i32, %c0_i32_0 : i32, i32
  }
  func.func @transform_3(%arg0: i32) -> (i32, i32) {
    %c0_i32 = arith.constant 0 : i32
    %c0_i32_0 = arith.constant 0 : i32
    return %arg0, %c0_i32 : i32, i32
  }
}

</mosaic_0001>

<llo_original>
// kernel: tile.8
$region0: #{tile.8}
  #allocation0 [shape = 's32[1]{0}', space=sflag, size = 0x4, scoped, tag = 'scoped memory for tile.8']
  %s0 = inlined_call_operand.vmem [shape: f32[8], index: 0, kind: input, shape index: {}]
  %s1 = inlined_call_operand.vmem [shape: f32[32,8], index: 1, kind: output, shape index: {}]
  // Predicated region
  $region2: #{tile.8} parent=0 // pred_check
    _
  $region3: #{tile.8} parent=0 // pred_check_branch
    %3 = sbr.rel (0) target = $region5
  $region4: #{tile.8} parent=0 // pred_region
    _
  $region5: #{tile.8} parent=0 // pred_fallthru
    _
  %v4 = vld [vmem:[%s0] ss:$0 sm:$0xff]
  %5 = vst [vmem:[%s1] sm:$0xff] %v4
  %s6 = scalar_lea.vmem %s1, 8
  %7 = vst [vmem:[%s6] sm:$0xff] %v4
  %s8 = scalar_lea.vmem %s1, 16
  %9 = vst [vmem:[%s8] sm:$0xff] %v4
  %s10 = scalar_lea.vmem %s1, 24
  %11 = vst [vmem:[%s10] sm:$0xff] %v4

// kernel: tile.9
$region0: #{tile.9}
  %s0 = inlined_call_operand.vmem [shape: f32[32,8], index: 0, kind: input, shape index: {}]
  %s1 = inlined_call_operand.vmem [shape: f32[1,256], index: 1, kind: output, shape index: {}]
  $region1: #{tile.9} parent=0
    #allocation0 [shape = 'u8[8192]{0}', space=vmem, size = 0x2000, scoped, tag = 'scoped mem for output reshape']
    %s2 = smov 3
    %v3 = vld [vmem:[%s0] ss:$16 sm:%s2]
    %vm4 = vcmask 64512
    %5 = vst.msk [vmem:[#allocation0] ss:$8 sm:$0x3] %vm4, %v3
    %s6 = scalar_lea.vmem %s0, 15
    %s7 = smov 3
    %v8 = vld [vmem:[%s6] ss:$16 sm:%s7]
    %9 = vrot.lane.b32.xlu0 %v8, 120
    %v10 = vpop.permute.xlu0 %9
    %vm11 = vcmask 1048512
    %12 = vst.msk [vmem:[#allocation0] ss:$8 sm:$0x3] %vm11, %v10
    %s13 = scalar_lea.vmem %s0, 14
    %s14 = smov 3
    %v15 = vld [vmem:[%s13] ss:$16 sm:%s14]
    %16 = vrot.lane.b32.xlu0 %v15, 112
    %v17 = vpop.permute.xlu0 %16
    %vm18 = vcmask 982912
    %19 = vst.msk [vmem:[#allocation0] ss:$8 sm:$0x3] %vm18, %v17
    %s20 = scalar_lea.vmem %s0, 13
    %s21 = smov 3
    %v22 = vld [vmem:[%s20] ss:$16 sm:%s21]
    %23 = vrot.lane.b32.xlu0 %v22, 104
    %v24 = vpop.permute.xlu0 %23
    %vm25 = vcmask 917312
    %26 = vst.msk [vmem:[#allocation0] ss:$8 sm:$0x3] %vm25, %v24
    %s27 = scalar_lea.vmem %s0, 12
    %s28 = smov 3
    %v29 = vld [vmem:[%s27] ss:$16 sm:%s28]
    %30 = vrot.lane.b32.xlu0 %v29, 96
    %v31 = vpop.permute.xlu0 %30
    %vm32 = vcmask 851712
    %33 = vst.msk [vmem:[#allocation0] ss:$8 sm:$0x3] %vm32, %v31
    %s34 = scalar_lea.vmem %s0, 11
    %s35 = smov 3
    %v36 = vld [vmem:[%s34] ss:$16 sm:%s35]
    %37 = vrot.lane.b32.xlu0 %v36, 88
    %v38 = vpop.permute.xlu0 %37
    %vm39 = vcmask 786112
    %40 = vst.msk [vmem:[#allocation0] ss:$8 sm:$0x3] %vm39, %v38
    %s41 = scalar_lea.vmem %s0, 10
    %s42 = smov 3
    %v43 = vld [vmem:[%s41] ss:$16 sm:%s42]
    %44 = vrot.lane.b32.xlu0 %v43, 80
    %v45 = vpop.permute.xlu0 %44
    %vm46 = vcmask 720512
    %47 = vst.msk [vmem:[#allocation0] ss:$8 sm:$0x3] %vm46, %v45
    %s48 = scalar_lea.vmem %s0, 9
    %s49 = smov 3
    %v50 = vld [vmem:[%s48] ss:$16 sm:%s49]
    %51 = vrot.lane.b32.xlu0 %v50, 72
    %v52 = vpop.permute.xlu0 %51
    %vm53 = vcmask 654912
    %54 = vst.msk [vmem:[#allocation0] ss:$8 sm:$0x3] %vm53, %v52
    %s55 = scalar_lea.vmem %s0, 8
    %s56 = smov 3
    %v57 = vld [vmem:[%s55] ss:$16 sm:%s56]
    %58 = vrot.lane.b32.xlu0 %v57, 64
    %v59 = vpop.permute.xlu0 %58
    %vm60 = vcmask 589312
    %61 = vst.msk [vmem:[#allocation0] ss:$8 sm:$0x3] %vm60, %v59
    %s62 = scalar_lea.vmem %s0, 7
    %s63 = smov 3
    %v64 = vld [vmem:[%s62] ss:$16 sm:%s63]
    %65 = vrot.lane.b32.xlu0 %v64, 56
    %v66 = vpop.permute.xlu0 %65
    %vm67 = vcmask 523712
    %68 = vst.msk [vmem:[#allocation0] ss:$8 sm:$0x3] %vm67, %v66
    %s69 = scalar_lea.vmem %s0, 6
    %s70 = smov 3
    %v71 = vld [vmem:[%s69] ss:$16 sm:%s70]
    %72 = vrot.lane.b32.xlu0 %v71, 48
    %v73 = vpop.permute.xlu0 %72
    %vm74 = vcmask 458112
    %75 = vst.msk [vmem:[#allocation0] ss:$8 sm:$0x3] %vm74, %v73
    %s76 = scalar_lea.vmem %s0, 5
    %s77 = smov 3
    %v78 = vld [vmem:[%s76] ss:$16 sm:%s77]
    %79 = vrot.lane.b32.xlu0 %v78, 40
    %v80 = vpop.permute.xlu0 %79
    %vm81 = vcmask 392512
    %82 = vst.msk [vmem:[#allocation0] ss:$8 sm:$0x3] %vm81, %v80
    %s83 = scalar_lea.vmem %s0, 4
    %s84 = smov 3
    %v85 = vld [vmem:[%s83] ss:$16 sm:%s84]
    %86 = vrot.lane.b32.xlu0 %v85, 32
    %v87 = vpop.permute.xlu0 %86
    %vm88 = vcmask 326912
    %89 = vst.msk [vmem:[#allocation0] ss:$8 sm:$0x3] %vm88, %v87
    %s90 = scalar_lea.vmem %s0, 3
    %s91 = smov 3
    %v92 = vld [vmem:[%s90] ss:$16 sm:%s91]
    %93 = vrot.lane.b32.xlu0 %v92, 24
    %v94 = vpop.permute.xlu0 %93
    %vm95 = vcmask 261312
    %96 = vst.msk [vmem:[#allocation0] ss:$8 sm:$0x3] %vm95, %v94
    %s97 = scalar_lea.vmem %s0, 2
    %s98 = smov 3
    %v99 = vld [vmem:[%s97] ss:$16 sm:%s98]
    %100 = vrot.lane.b32.xlu0 %v99, 16
    %v101 = vpop.permute.xlu0 %100
    %vm102 = vcmask 195712
    %103 = vst.msk [vmem:[#allocation0] ss:$8 sm:$0x3] %vm102, %v101
    %s104 = scalar_lea.vmem %s0, 1
    %s105 = smov 3
    %v106 = vld [vmem:[%s104] ss:$16 sm:%s105]
    %107 = vrot.lane.b32.xlu0 %v106, 8
    %v108 = vpop.permute.xlu0 %107
    %vm109 = vcmask 130112
    %110 = vst.msk [vmem:[#allocation0] ss:$8 sm:$0x3] %vm109, %v108
    %s112 = sshllo.u32 0, 1
    %v114 = vld [vmem:[#allocation0] sm:%s112]
    %s115 = sshllo.u32 0, 1
    %116 = vst [vmem:[%s1] sm:%s115] %v114
    %s117 = scalar_lea.vmem [#allocation0], 8
    %v118 = vld [vmem:[%s117] sm:%s112]
    %s119 = sshllo.u32 0, 1
    %s120 = scalar_lea.vmem %s1, 1
    %121 = vst [vmem:[%s120] sm:%s119] %v118

// kernel: test_encoder_forward.1
$region0: #{test_encoder_forward.1}
  #allocation0 [shape = 'u32[]', space=smem, size = 0x4, offset = 0x4, fixed_abs, tag = 'smem constant byte address 0x4 - core index']
  #allocation1 [shape = 'u32[144,128]{1,0:T(1,128)}', space=vmem, size = 0x12000, scoped, tag = 'internal scratch']
  %s0 = inlined_call_operand.vmem [shape: f32[8,128], index: 0, kind: input, shape index: {}]
  %s1 = inlined_call_operand.vmem [shape: f32[128,256], index: 1, kind: input, shape index: {}]
  %s2 = inlined_call_operand.vmem [shape: f32[1,256], index: 2, kind: input, shape index: {}]
  %s3 = inlined_call_operand.vmem [shape: f32[8,256], index: 3, kind: output, shape index: {}]
  %s4 = sld [smem:[#allocation0]]
  $region22: #{test_encoder_forward.1} parent=0
    _
  %s6 = ssub.s32 1, %s4
  %s7 = scalar_select 0, %s6, %s4
  // Predicated region
  $region2: #{test_encoder_forward.1} parent=0 // pred_check
    _
  $region3: #{test_encoder_forward.1} parent=0 // pred_check_branch
    %9 = sbr.rel (0) target = $region5
  $region4: #{test_encoder_forward.1} parent=0 // pred_region
    _
  $region5: #{test_encoder_forward.1} parent=0 // pred_fallthru
    _
  // Predicated region
  $region6: #{test_encoder_forward.1} parent=0 // pred_check
    _
  $region7: #{test_encoder_forward.1} parent=0 // pred_check_branch
    %11 = sbr.rel (0) target = $region9
  $region8: #{test_encoder_forward.1} parent=0 // pred_region
    _
  $region9: #{test_encoder_forward.1} parent=0 // pred_fallthru
    _
  // Predicated region
  $region10: #{test_encoder_forward.1} parent=0 // pred_check
    _
  $region11: #{test_encoder_forward.1} parent=0 // pred_check_branch
    %13 = sbr.rel (0) target = $region13
  $region12: #{test_encoder_forward.1} parent=0 // pred_region
    _
  $region13: #{test_encoder_forward.1} parent=0 // pred_fallthru
    _
  %v14 = vld [vmem:[%s0] sm:$0xff]
  %v15 = vld [vmem:[%s1] sm:$0xff]
  %v16 = vld [vmem:[%s1 + $0x8] sm:$0xff]
  %v17 = vld [vmem:[%s1 + $0x10] sm:$0xff]
  %v18 = vld [vmem:[%s1 + $0x18] sm:$0xff]
  %v19 = vld [vmem:[%s1 + $0x20] sm:$0xff]
  %v20 = vld [vmem:[%s1 + $0x28] sm:$0xff]
  %v21 = vld [vmem:[%s1 + $0x30] sm:$0xff]
  %v22 = vld [vmem:[%s1 + $0x38] sm:$0xff]
  %v23 = vld [vmem:[%s1 + $0x40] sm:$0xff]
  %v24 = vld [vmem:[%s1 + $0x48] sm:$0xff]
  %v25 = vld [vmem:[%s1 + $0x50] sm:$0xff]
  %v26 = vld [vmem:[%s1 + $0x58] sm:$0xff]
  %v27 = vld [vmem:[%s1 + $0x60] sm:$0xff]
  %v28 = vld [vmem:[%s1 + $0x68] sm:$0xff]
  %v29 = vld [vmem:[%s1 + $0x70] sm:$0xff]
  %v30 = vld [vmem:[%s1 + $0x78] sm:$0xff]
  %v31 = vld [vmem:[%s1 + $0x80] sm:$0xff]
  %v32 = vld [vmem:[%s1 + $0x88] sm:$0xff]
  %v33 = vld [vmem:[%s1 + $0x90] sm:$0xff]
  %v34 = vld [vmem:[%s1 + $0x98] sm:$0xff]
  %v35 = vld [vmem:[%s1 + $0xa0] sm:$0xff]
  %v36 = vld [vmem:[%s1 + $0xa8] sm:$0xff]
  %v37 = vld [vmem:[%s1 + $0xb0] sm:$0xff]
  %v38 = vld [vmem:[%s1 + $0xb8] sm:$0xff]
  %v39 = vld [vmem:[%s1 + $0xc0] sm:$0xff]
  %v40 = vld [vmem:[%s1 + $0xc8] sm:$0xff]
  %v41 = vld [vmem:[%s1 + $0xd0] sm:$0xff]
  %v42 = vld [vmem:[%s1 + $0xd8] sm:$0xff]
  %v43 = vld [vmem:[%s1 + $0xe0] sm:$0xff]
  %v44 = vld [vmem:[%s1 + $0xe8] sm:$0xff]
  %v45 = vld [vmem:[%s1 + $0xf0] sm:$0xff]
  %v46 = vld [vmem:[%s1 + $0xf8] sm:$0xff]
  %v47 = vld [vmem:[%s2] sm:$0x3]
  %v49 = vlaneseq
  %v50 = vshrl.u32 %v49, 7
  %v51 = vsub.s32 0, %v50
  %v52 = vrot.slane %v47, %v51
  %v53 = vlaneseq
  %v54 = vshrl.u32 %v53, 7
  %v55 = vsub.s32 1, %v54
  %v56 = vrot.slane %v47, %v55
  %59 = vmatprep.subr.mxu0 %v16
  %60 = vmatpush1.msra.mxu0 %v15
  %61 = vmatprep.subr.mxu0 %v18
  %62 = vmatpush1.msra.mxu0 %v17
  %63 = vmatprep.subr.mxu0 %v20
  %64 = vmatpush1.msra.mxu0 %v19
  %65 = vmatprep.subr.mxu0 %v22
  %66 = vmatpush1.msra.mxu0 %v21
  %67 = vmatprep.subr.mxu0 %v24
  %68 = vmatpush1.msra.mxu0 %v23
  %69 = vmatprep.subr.mxu0 %v26
  %70 = vmatpush1.msra.mxu0 %v25
  %71 = vmatprep.subr.mxu0 %v28
  %72 = vmatpush1.msra.mxu0 %v27
  %73 = vmatprep.subr.mxu0 %v30
  %74 = vmatpush1.msra.mxu0 %v29
  %75 = vmatprep.subr.mxu0 %v32
  %76 = vmatpush1.msra.mxu0 %v31
  %77 = vmatprep.subr.mxu0 %v34
  %78 = vmatpush1.msra.mxu0 %v33
  %79 = vmatprep.subr.mxu0 %v36
  %80 = vmatpush1.msra.mxu0 %v35
  %81 = vmatprep.subr.mxu0 %v38
  %82 = vmatpush1.msra.mxu0 %v37
  %83 = vmatprep.subr.mxu0 %v40
  %84 = vmatpush1.msra.mxu0 %v39
  %85 = vmatprep.subr.mxu0 %v42
  %86 = vmatpush1.msra.mxu0 %v41
  %87 = vmatprep.subr.mxu0 %v44
  %88 = vmatpush1.msra.mxu0 %v43
  %89 = vmatprep.subr.mxu0 %v46
  %90 = vmatpush1.msra.mxu0 %v45
  %91 = vmatprep.subr.mxu0 0.0
  %92 = vmatpush1.msra.mxu0 0.0
  %93 = vmatprep.subr.mxu0 0.0
  %94 = vmatpush1.msra.mxu0 0.0
  %95 = vmatprep.subr.mxu0 0.0
  %96 = vmatpush1.msra.mxu0 0.0
  %97 = vmatprep.subr.mxu0 0.0
  %98 = vmatpush1.msra.mxu0 0.0
  %99 = vmatprep.subr.mxu0 0.0
  %100 = vmatpush1.msra.mxu0 0.0
  %101 = vmatprep.subr.mxu0 0.0
  %102 = vmatpush1.msra.mxu0 0.0
  %103 = vmatprep.subr.mxu0 0.0
  %104 = vmatpush1.msra.mxu0 0.0
  %105 = vmatprep.subr.mxu0 0.0
  %106 = vmatpush1.msra.mxu0 0.0
  %107 = vmatprep.subr.mxu0 0.0
  %108 = vmatpush1.msra.mxu0 0.0
  %109 = vmatprep.subr.mxu0 0.0
  %110 = vmatpush1.msra.mxu0 0.0
  %111 = vmatprep.subr.mxu0 0.0
  %112 = vmatpush1.msra.mxu0 0.0
  %113 = vmatprep.subr.mxu0 0.0
  %114 = vmatpush1.msra.mxu0 0.0
  %115 = vmatprep.subr.mxu0 0.0
  %116 = vmatpush1.msra.mxu0 0.0
  %117 = vmatprep.subr.mxu0 0.0
  %118 = vmatpush1.msra.mxu0 0.0
  %119 = vmatprep.subr.mxu0 0.0
  %120 = vmatpush1.msra.mxu0 0.0
  %121 = vmatprep.subr.mxu0 0.0
  %122 = vmatpush1.msra.mxu0 0.0
  %123 = vmatprep.mubr.f32.mxu0 0.0
  %124 = vmatmul.mubr.f32.gmra.mrb[0].mxu0 %v14
  %v125 = vpop.f32.mrb[0].mxu0
  %v126 = vadd.f32 %v52, %v125
  %v127 = vpop.f32.mrb[0].mxu0
  %v128 = vadd.f32 %v56, %v127
  %129 = vdwg.mxu0
  %130 = vst [vmem:[%s3] sm:$0xff] %v126
  %131 = vst [vmem:[%s3 + $0x8] sm:$0xff] %v128
  // Predicated region
  $region14: #{test_encoder_forward.1} parent=0 // pred_check
    _
  $region15: #{test_encoder_forward.1} parent=0 // pred_check_branch
    %133 = sbr.rel (0) target = $region17
  $region16: #{test_encoder_forward.1} parent=0 // pred_region
    _
  $region17: #{test_encoder_forward.1} parent=0 // pred_fallthru
    _
  // Predicated region
  $region18: #{test_encoder_forward.1} parent=0 // pred_check
    _
  $region19: #{test_encoder_forward.1} parent=0 // pred_check_branch
    %135 = sbr.rel (0) target = $region21
  $region20: #{test_encoder_forward.1} parent=0 // pred_region
    _
  $region21: #{test_encoder_forward.1} parent=0 // pred_fallthru
    _

</llo_original>
